<compile_context>
chip_gen: v7x
topology: tpu7x:2x2x1
jax: 0.10.0
libtpu: 0.0.40
codegen_flags: <defaults>
</compile_context>

<pallas_src>
import jax
import jax.numpy as jnp
from jax.experimental import pallas as pl
from jax.experimental.pallas import tpu as pltpu


def _round_up(x, m):
    return ((x + m - 1) // m) * m


def _upconv_prelu_kernel(x_ref, w_ref, b_ref, a_ref, o_ref):
    """One block of rows of the fused transposed-conv(2,2) + PReLU.

    x_ref: (TM, Cin)        activation rows (one row per input voxel)
    w_ref: (Cin, 8*Cout)    weights, columns ordered (od, oh, ow, cout)
    b_ref: (1, 8*Cout)      bias, tiled 8x over the sub-positions
    a_ref: (1, 8*Cout)      PReLU slope, tiled 8x over the sub-positions
    o_ref: (TM, 8*Cout)     output block (lane-dense)
    """
    y = jnp.dot(x_ref[...], w_ref[...], preferred_element_type=jnp.float32)
    y = y + b_ref[...]
    y = jnp.where(y > 0, y, y * a_ref[...])          # per-channel PReLU
    o_ref[...] = y.astype(o_ref.dtype)


def up_forward(x_ncdhw, w, b, alpha, *, tm=512):
    """Pallas implementation of Up.forward.

    x_ncdhw: (N, Cin, D, H, W)                PyTorch NCDHW input
    w:       (Cin, Cout, 2, 2, 2)             PyTorch ConvTranspose3d weight
    b,alpha: (Cout,)                          bias / PReLU slope
    returns  (N, Cout, 2D, 2H, 2W)
    """
    N, Cin, D, H, W = x_ncdhw.shape
    Cout = w.shape[1]
    Kout = 8 * Cout

    # ---- layout plumbing (wrapper side, cheap XLA reshapes) ----------------
    # activations: NCDHW -> (M, Cin), one row per input voxel
    x_mat = jnp.transpose(x_ncdhw, (0, 2, 3, 4, 1)).reshape(N * D * H * W, Cin)
    # weights: (Cin, Cout, kd, kh, kw) -> (Cin, kd, kh, kw, Cout) -> (Cin, 8*Cout)
    w_mat = jnp.transpose(w, (0, 2, 3, 4, 1)).reshape(Cin, Kout)
    # bias / alpha tiled over the 8 sub-positions (column order matches w_mat)
    b_row = jnp.tile(b.astype(jnp.float32), 8).reshape(1, Kout)
    a_row = jnp.tile(alpha.astype(jnp.float32), 8).reshape(1, Kout)

    M = x_mat.shape[0]
    tm = min(tm, _round_up(M, 8))
    Mp = _round_up(M, tm)
    if Mp != M:
        x_mat = jnp.pad(x_mat, ((0, Mp - M), (0, 0)))

    y_mat = pl.pallas_call(
        _upconv_prelu_kernel,
        out_shape=jax.ShapeDtypeStruct((Mp, Kout), x_ncdhw.dtype),
        grid=(Mp // tm,),
        in_specs=[
            pl.BlockSpec((tm, Cin), lambda i: (i, 0)),    # activation block
            pl.BlockSpec((Cin, Kout), lambda i: (0, 0)),  # full weights
            pl.BlockSpec((1, Kout), lambda i: (0, 0)),    # bias
            pl.BlockSpec((1, Kout), lambda i: (0, 0)),    # prelu alpha
        ],
        out_specs=pl.BlockSpec((tm, Kout), lambda i: (i, 0)),
        compiler_params=pltpu.CompilerParams(
            dimension_semantics=("parallel",)),           # megacore on v7x
    )(x_mat, w_mat, b_row, a_row)

    y_mat = y_mat[:M]
    # (M, 8*Cout) -> (N, D, H, W, od, oh, ow, Cout) -> (N, Cout, 2D, 2H, 2W)
    y = y_mat.reshape(N, D, H, W, 2, 2, 2, Cout)
    y = jnp.transpose(y, (0, 7, 1, 4, 2, 5, 3, 6))
    return y.reshape(N, Cout, 2 * D, 2 * H, 2 * W)


def up_reference(x_ncdhw, w, b, alpha):
    """Independent pure-JAX reference: transposed conv via lhs-dilated conv."""
    # ConvTranspose(k=2, s=2, p=0) == conv(dilate(x, 2), flip(W), pad=1)
    w_flip = w[:, :, ::-1, ::-1, ::-1]                    # flip spatial dims
    w_dir = jnp.transpose(w_flip, (2, 3, 4, 0, 1))        # (kd,kh,kw,Cin,Cout)
    x = jnp.transpose(x_ncdhw, (0, 2, 3, 4, 1))           # NDHWC
    y = jax.lax.conv_general_dilated(
        x, w_dir, window_strides=(1, 1, 1),
        padding=((1, 1), (1, 1), (1, 1)),
        lhs_dilation=(2, 2, 2),
        dimension_numbers=("NDHWC", "DHWIO", "NDHWC"))
    y = y + b
    y = jnp.where(y > 0, y, y * alpha)                    # per-channel PReLU
    return jnp.transpose(y, (0, 4, 1, 2, 3))              # -> NCDHW


def init_up_params(key, in_channel, out_channel):
    """(ConvTranspose3d weight, bias, PReLU alpha) in PyTorch layouts."""
    k_w, k_b = jax.random.split(key)
    w = 0.05 * jax.random.normal(
        k_w, (in_channel, out_channel, 2, 2, 2), jnp.float32)
    b = 0.05 * jax.random.normal(k_b, (out_channel,), jnp.float32)
    a = jnp.full((out_channel,), 0.25, jnp.float32)       # PReLU default init
    return w, b, a


if __name__ == "__main__":
    key = jax.random.PRNGKey(0)
    k_x, k_p = jax.random.split(key)

    in_channel, out_channel = 8, 16     # 8*Cout = 128 -> lane-dense output
    N, D, H, W = 2, 8, 8, 8

    x = jax.random.normal(k_x, (N, in_channel, D, H, W), jnp.float32)  # NCDHW
    w, b, a = init_up_params(k_p, in_channel, out_channel)

    out = jax.block_until_ready(up_forward(x, w, b, a))
    assert out.shape == (N, out_channel, 2 * D, 2 * H, 2 * W), out.shape

    ref = jax.block_until_ready(up_reference(x, w, b, a))
    max_err = float(jnp.max(jnp.abs(out - ref)))
    if not jnp.allclose(out, ref, atol=2e-3, rtol=2e-3):
        raise AssertionError(f"Pallas Up mismatch, max abs err = {max_err}")

    print("KERNEL_OK")
</pallas_src>

<mosaic_0001>
module attributes {stable_mosaic.version = 11 : i64} {
  func.func @_upconv_prelu_kernel(%arg0: i32, %arg1: memref<512x8xf32, #tpu.memory_space<vmem>>, %arg2: memref<8x128xf32, #tpu.memory_space<vmem>>, %arg3: memref<1x128xf32, #tpu.memory_space<vmem>>, %arg4: memref<1x128xf32, #tpu.memory_space<vmem>>, %arg5: memref<512x128xf32, #tpu.memory_space<vmem>>) attributes {dimension_semantics = [#tpu.dimension_semantics<parallel>], iteration_bounds = array<i64: 2>, scalar_prefetch = 0 : i64, scratch_operands = 0 : i64, tpu.core_type = #tpu.core_type<tc>, window_params = [{transform_indices = @transform_0, window_bounds = array<i64: 512, 8>}, {pipeline_mode = #tpu.pipeline_mode<synchronous>, transform_indices = @transform_1, window_bounds = array<i64: 8, 128>}, {pipeline_mode = #tpu.pipeline_mode<synchronous>, transform_indices = @transform_2, window_bounds = array<i64: 1, 128>}, {pipeline_mode = #tpu.pipeline_mode<synchronous>, transform_indices = @transform_3, window_bounds = array<i64: 1, 128>}, {transform_indices = @transform_4, window_bounds = array<i64: 512, 128>}]} {
    %c0 = arith.constant 0 : index
    %c0_0 = arith.constant 0 : index
    %0 = vector.load %arg1[%c0, %c0_0] : memref<512x8xf32, #tpu.memory_space<vmem>>, vector<512x8xf32>
    %c0_1 = arith.constant 0 : index
    %c0_2 = arith.constant 0 : index
    %1 = vector.load %arg2[%c0_1, %c0_2] : memref<8x128xf32, #tpu.memory_space<vmem>>, vector<8x128xf32>
    %cst = arith.constant dense<0.000000e+00> : vector<512x128xf32>
    %2 = tpu.matmul %0, %1, %cst {dimension_numbers = #tpu.dot_dimension_numbers<[1], [0], [0], [1], [0, 0, 1, 1], [], []>} : vector<512x8xf32>, vector<8x128xf32>, vector<512x128xf32> -> vector<512x128xf32>
    %c0_3 = arith.constant 0 : index
    %c0_4 = arith.constant 0 : index
    %3 = vector.load %arg3[%c0_3, %c0_4] : memref<1x128xf32, #tpu.memory_space<vmem>>, vector<1x128xf32>
    %4 = vector.broadcast %3 : vector<1x128xf32> to vector<512x128xf32>
    %5 = arith.addf %2, %4 : vector<512x128xf32>
    %cst_5 = arith.constant 0.000000e+00 : f32
    %6 = vector.broadcast %cst_5 : f32 to vector<512x128xf32>
    %7 = arith.cmpf ogt, %5, %6 : vector<512x128xf32>
    %c0_6 = arith.constant 0 : index
    %c0_7 = arith.constant 0 : index
    %8 = vector.load %arg4[%c0_6, %c0_7] : memref<1x128xf32, #tpu.memory_space<vmem>>, vector<1x128xf32>
    %9 = vector.broadcast %8 : vector<1x128xf32> to vector<512x128xf32>
    %10 = arith.mulf %5, %9 : vector<512x128xf32>
    %11 = arith.select %7, %5, %10 : vector<512x128xi1>, vector<512x128xf32>
    %c0_8 = arith.constant 0 : index
    %c0_9 = arith.constant 0 : index
    %12 = vector.load %arg5[%c0_8, %c0_9] : memref<512x128xf32, #tpu.memory_space<vmem>>, vector<512x128xf32>
    tpu.vector_store %arg5[%c0_8, %c0_9], %11 {strides = array<i32>} : memref<512x128xf32, #tpu.memory_space<vmem>>, vector<512x128xf32>,
    return
  }
  func.func @transform_0(%arg0: i32) -> (i32, i32) {
    %c0_i32 = arith.constant 0 : i32
    %c0_i32_0 = arith.constant 0 : i32
    return %arg0, %c0_i32 : i32, i32
  }
  func.func @transform_1(%arg0: i32) -> (i32, i32) {
    %c0_i32 = arith.constant 0 : i32
    %c0_i32_0 = arith.constant 0 : i32
    %c0_i32_1 = arith.constant 0 : i32
    return %c0_i32, %c0_i32_0 : i32, i32
  }
  func.func @transform_2(%arg0: i32) -> (i32, i32) {
    %c0_i32 = arith.constant 0 : i32
    %c0_i32_0 = arith.constant 0 : i32
    %c0_i32_1 = arith.constant 0 : i32
    return %c0_i32, %c0_i32_0 : i32, i32
  }
  func.func @transform_3(%arg0: i32) -> (i32, i32) {
    %c0_i32 = arith.constant 0 : i32
    %c0_i32_0 = arith.constant 0 : i32
    %c0_i32_1 = arith.constant 0 : i32
    return %c0_i32, %c0_i32_0 : i32, i32
  }
  func.func @transform_4(%arg0: i32) -> (i32, i32) {
    %c0_i32 = arith.constant 0 : i32
    %c0_i32_0 = arith.constant 0 : i32
    return %arg0, %c0_i32 : i32, i32
  }
}

</mosaic_0001>

<llo_original>
// kernel: tpu_custom_call.1
$region0: #{tpu_custom_call.1}
  #allocation0 [shape = 'u32[]', space=smem, size = 0x4, offset = 0x4, fixed_abs, tag = 'smem constant byte address 0x4 - core index']
  #allocation1 [shape = 'u32[144,128]{1,0:T(1,128)}', space=vmem, size = 0x12000, scoped, tag = 'internal scratch']
  %s0 = inlined_call_operand.vmem [shape: f32[1024,8], index: 0, kind: input, shape index: {}]
  %s1 = inlined_call_operand.vmem [shape: f32[8,128], index: 1, kind: input, shape index: {}]
  %s2 = inlined_call_operand.vmem [shape: f32[1,128], index: 2, kind: input, shape index: {}]
  %s3 = inlined_call_operand.vmem [shape: f32[1,128], index: 3, kind: input, shape index: {}]
  %s4 = inlined_call_operand.hbm [shape: f32[1024,128], index: 4, kind: output, shape index: {}]
  %s5 = sld [smem:[#allocation0]]
  $region49: #{tpu_custom_call.1} parent=0
    _
  %s7 = ssub.s32 1, %s5
  %s8 = scalar_select 0, %s7, %s5
  $region1: #{tpu_custom_call.1} parent=0
    #allocation2 [shape = 'u8[524288]{0}', space=vmem, size = 0x80000, scoped, tag = 'output window, operand 0']
    #allocation3 [shape = 's32[2]{0}', space=sflag, size = 0x8, scoped, tag = 'scoped memory for tpu_custom_call.1']
    %9 = vsyncpa [#allocation3], 0
    %s10 = scalar_lea.sflag [#allocation3], 1
    %11 = vsyncpa %s10, 0
    loop: start=0, step=1, limit=4
    $region2: #{tpu_custom_call.1} parent=1 // loop_pre_header
      _
    $region3: #{tpu_custom_call.1} parent=1 // loop_header
      %s13 = sphi 0, %s17
      %p14 = scmp.ge.s32.totalorder %s13, 4
      %s23 = sphi 0, %s25
      %s26 = sphi 0, %s23
      %s27 = sphi 0, %s26
      %s43 = sphi 0, %s27
      %s47 = sphi 0, %s47
      %s49 = sphi 0, %s47
      %s50 = sphi 0, %s49
      %s64 = sphi 0, %s50
      %s68 = sphi 0, %s68
      %s70 = sphi 0, %s68
      %s71 = sphi 0, %s70
      %s85 = sphi 0, %s71
      %s89 = sphi 0, %s89
      %s91 = sphi 0, %s89
      %s92 = sphi 0, %s91
      %s106 = sphi 0, %s92
      %s112 = sphi 0, %s114
      %s115 = sphi 0, %s112
      %s116 = sphi 0, %s115
      %s132 = sphi 0, %s116
    $region4: #{tpu_custom_call.1} parent=1 // loop_header_branch
      %16 = sbr.rel (%p14) target = $region8
    $region5: #{tpu_custom_call.1} parent=1 // loop_body
      %s18 = ssub.s32 %s13, 1
      %s19 = ssub.s32 %s13, 2
      %s20 = sadd.s32 %s13, 1
      %s21 = ssub.s32 %s13, %s20
      %p22 = scmp.eq.s32.totalorder %s21, 0
      %s24 = sadd.s32 %s23, 1
      %s25 = scalar_select %p22, %s23, %s24
      %p28 = pneg %p22
      %p29 = scmp.eq.s32.totalorder %s13, 1
      %p30 = por %p28, %p29
      %p31 = scmp.ne.s32.totalorder %s23, %s26
      %p32 = scmp.eq.s32.totalorder %s13, 0
      %p33 = por %p31, %p32
      %p34 = scmp.ne.s32.totalorder %s23, %s26
      %p35 = scmp.eq.s32.totalorder %s18, 1
      %p36 = por %p34, %p35
      %p37 = scmp.ne.s32.totalorder %s26, %s27
      %p38 = scmp.eq.s32.totalorder %s18, 0
      %p39 = por %p37, %p38
      %p40 = scmp.ne.s32.totalorder %s26, %s27
      %p41 = scmp.eq.s32.totalorder %s19, 1
      %p42 = por %p40, %p41
      %p44 = scmp.ne.s32.totalorder %s27, %s43
      %p45 = scmp.eq.s32.totalorder %s19, 0
      %p46 = por %p44, %p45
      %s48 = sadd.s32 %s47, 1
      %p51 = scmp.eq.s32.totalorder %s13, 1
      %p52 = scmp.ne.s32.totalorder %s47, %s49
      %p53 = scmp.eq.s32.totalorder %s13, 0
      %p54 = por %p52, %p53
      %p55 = scmp.ne.s32.totalorder %s47, %s49
      %p56 = scmp.eq.s32.totalorder %s18, 1
      %p57 = por %p55, %p56
      %p58 = scmp.ne.s32.totalorder %s49, %s50
      %p59 = scmp.eq.s32.totalorder %s18, 0
      %p60 = por %p58, %p59
      %p61 = scmp.ne.s32.totalorder %s49, %s50
      %p62 = scmp.eq.s32.totalorder %s19, 1
      %p63 = por %p61, %p62
      %p65 = scmp.ne.s32.totalorder %s50, %s64
      %p66 = scmp.eq.s32.totalorder %s19, 0
      %p67 = por %p65, %p66
      %s69 = sadd.s32 %s68, 1
      %p72 = scmp.eq.s32.totalorder %s13, 1
      %p73 = scmp.ne.s32.totalorder %s68, %s70
      %p74 = scmp.eq.s32.totalorder %s13, 0
      %p75 = por %p73, %p74
      %p76 = scmp.ne.s32.totalorder %s68, %s70
      %p77 = scmp.eq.s32.totalorder %s18, 1
      %p78 = por %p76, %p77
      %p79 = scmp.ne.s32.totalorder %s70, %s71
      %p80 = scmp.eq.s32.totalorder %s18, 0
      %p81 = por %p79, %p80
      %p82 = scmp.ne.s32.totalorder %s70, %s71
      %p83 = scmp.eq.s32.totalorder %s19, 1
      %p84 = por %p82, %p83
      %p86 = scmp.ne.s32.totalorder %s71, %s85
      %p87 = scmp.eq.s32.totalorder %s19, 0
      %p88 = por %p86, %p87
      %s90 = sadd.s32 %s89, 1
      %p93 = scmp.eq.s32.totalorder %s13, 1
      %p94 = scmp.ne.s32.totalorder %s89, %s91
      %p95 = scmp.eq.s32.totalorder %s13, 0
      %p96 = por %p94, %p95
      %p97 = scmp.ne.s32.totalorder %s89, %s91
      %p98 = scmp.eq.s32.totalorder %s18, 1
      %p99 = por %p97, %p98
      %p100 = scmp.ne.s32.totalorder %s91, %s92
      %p101 = scmp.eq.s32.totalorder %s18, 0
      %p102 = por %p100, %p101
      %p103 = scmp.ne.s32.totalorder %s91, %s92
      %p104 = scmp.eq.s32.totalorder %s19, 1
      %p105 = por %p103, %p104
      %p107 = scmp.ne.s32.totalorder %s92, %s106
      %p108 = scmp.eq.s32.totalorder %s19, 0
      %p109 = por %p107, %p108
      %s110 = ssub.s32 %s13, %s20
      %p111 = scmp.eq.s32.totalorder %s110, 0
      %s113 = sadd.s32 %s112, 1
      %s114 = scalar_select %p111, %s112, %s113
      %p117 = pneg %p111
      %p118 = scmp.eq.s32.totalorder %s13, 1
      %p119 = por %p117, %p118
      %p120 = scmp.ne.s32.totalorder %s112, %s115
      %p121 = scmp.eq.s32.totalorder %s13, 0
      %p122 = por %p120, %p121
      %p123 = scmp.ne.s32.totalorder %s112, %s115
      %p124 = scmp.eq.s32.totalorder %s18, 1
      %p125 = por %p123, %p124
      %p126 = scmp.ne.s32.totalorder %s115, %s116
      %p127 = scmp.eq.s32.totalorder %s18, 0
      %p128 = por %p126, %p127
      %p129 = scmp.ne.s32.totalorder %s115, %s116
      %p130 = scmp.eq.s32.totalorder %s19, 1
      %p131 = por %p129, %p130
      %p133 = scmp.ne.s32.totalorder %s116, %s132
      %p134 = scmp.eq.s32.totalorder %s19, 0
      %p135 = por %p133, %p134
      %p136 = scmp.le.s32.totalorder 1, %s13
      %p137 = scmp.lt.s32.totalorder %s13, 3
      %p138 = pnand %p136, %p137
      %p139 = pneg %p138
      // Predicated region
      $region9: #{tpu_custom_call.1} parent=5 // pred_check
        _
      $region10: #{tpu_custom_call.1} parent=5 // pred_check_branch
        %141 = sbr.rel (%p138) target = $region12
      $region11: #{tpu_custom_call.1} parent=5 // pred_region
        %s142 = ssub.s32 %s13, 1
        // Predicated region
        $region13: #{tpu_custom_call.1} parent=11 // pred_check
          %p143 = pneg %p60
        $region14: #{tpu_custom_call.1} parent=11 // pred_check_branch
          %145 = sbr.rel (%p143) target = $region16
        $region15: #{tpu_custom_call.1} parent=11 // pred_region
          _
        $region16: #{tpu_custom_call.1} parent=11 // pred_fallthru
          _
        // Predicated region
        $region17: #{tpu_custom_call.1} parent=11 // pred_check
          %p146 = pneg %p81
        $region18: #{tpu_custom_call.1} parent=11 // pred_check_branch
          %148 = sbr.rel (%p146) target = $region20
        $region19: #{tpu_custom_call.1} parent=11 // pred_region
          _
        $region20: #{tpu_custom_call.1} parent=11 // pred_fallthru
          _
        // Predicated region
        $region21: #{tpu_custom_call.1} parent=11 // pred_check
          %p149 = pneg %p102
        $region22: #{tpu_custom_call.1} parent=11 // pred_check_branch
          %151 = sbr.rel (%p149) target = $region24
        $region23: #{tpu_custom_call.1} parent=11 // pred_region
          _
        $region24: #{tpu_custom_call.1} parent=11 // pred_fallthru
          _
      $region12: #{tpu_custom_call.1} parent=5 // pred_fallthru
        _
      %p152 = scmp.lt.s32.totalorder %s13, 2
      // Predicated region
      $region25: #{tpu_custom_call.1} parent=5 // pred_check
        %p153 = pneg %p152
      $region26: #{tpu_custom_call.1} parent=5 // pred_check_branch
        %155 = sbr.rel (%p153) target = $region28
      $region27: #{tpu_custom_call.1} parent=5 // pred_region
        // Predicated region
        $region29: #{tpu_custom_call.1} parent=27 // pred_check
          %p156 = pneg %p33
        $region30: #{tpu_custom_call.1} parent=27 // pred_check_branch
          %158 = sbr.rel (%p156) target = $region32
        $region31: #{tpu_custom_call.1} parent=27 // pred_region
          %s159 = smul.u32 64, %s13
          %p160 = scmp.lt.s32.totalorder %s159, 127
          %s161 = scalar_select %p160, %s159, 127
          %s162 = smul.addr %s161, 8
          %s163 = scalar_lea.vmem %s0, %s162
          %s164 = smul.u32 64, %s13
        $region32: #{tpu_custom_call.1} parent=27 // pred_fallthru
          _
      $region28: #{tpu_custom_call.1} parent=5 // pred_fallthru
        _
      %p165 = scmp.le.s32.totalorder 1, %s13
      %p166 = scmp.lt.s32.totalorder %s13, 3
      %p167 = pnand %p165, %p166
      %p168 = pneg %p167
      // Predicated region
      $region33: #{tpu_custom_call.1} parent=5 // pred_check
        _
      $region34: #{tpu_custom_call.1} parent=5 // pred_check_branch
        %170 = sbr.rel (%p167) target = $region36
      $region35: #{tpu_custom_call.1} parent=5 // pred_region
        %s171 = ssub.s32 %s13, 1
        %s172 = smul.u32 64, %s18
        %p173 = scmp.lt.s32.totalorder %s172, 127
        %s174 = scalar_select %p173, %s172, 127
        %s175 = smul.addr %s174, 8
        %s176 = scalar_lea.vmem %s0, %s175
        %p177 = pneg %p39
        %p178 = pneg %p36
        %p179 = pneg %p60
        %p180 = pneg %p57
        %p181 = pneg %p81
        %p182 = pneg %p78
        %p183 = pneg %p102
        %p184 = pneg %p99
        %p185 = pneg %p128
        %p186 = pneg %p125
        %s187 = sand.u32 %s115, 1
        %s188 = scalar_lea.sflag [#allocation3], %s187
        %s189 = sand.u32 %s115, 1
        %s190 = smul.addr %s189, 512
        %s191 = scalar_lea.vmem [#allocation2], %s190
        %s192 = smul.u32 64, %s18
        %p193 = scmp.lt.s32.totalorder %s192, 127
        %s194 = scalar_select %p193, %s192, 127
        %s195 = smul.addr %s194, 8
        %s196 = scalar_lea.vmem %s0, %s195
        %s197 = smul.u32 64, %s18
        %s198 = smul.u32 64, %s18
        %v199 = vld [vmem:[%s196] sm:$0xff]
        %v200 = vld [vmem:[%s196 + $0x8] sm:$0xff]
        %v201 = vld [vmem:[%s196 + $0x10] sm:$0xff]
        %v202 = vld [vmem:[%s196 + $0x18] sm:$0xff]
        %v203 = vld [vmem:[%s196 + $0x20] sm:$0xff]
        %v204 = vld [vmem:[%s196 + $0x28] sm:$0xff]
        %v205 = vld [vmem:[%s196 + $0x30] sm:$0xff]
        %v206 = vld [vmem:[%s196 + $0x38] sm:$0xff]
        %v207 = vld [vmem:[%s196 + $0x40] sm:$0xff]
        %v208 = vld [vmem:[%s196 + $0x48] sm:$0xff]
        %v209 = vld [vmem:[%s196 + $0x50] sm:$0xff]
        %v210 = vld [vmem:[%s196 + $0x58] sm:$0xff]
        %v211 = vld [vmem:[%s196 + $0x60] sm:$0xff]
        %v212 = vld [vmem:[%s196 + $0x68] sm:$0xff]
        %v213 = vld [vmem:[%s196 + $0x70] sm:$0xff]
        %v214 = vld [vmem:[%s196 + $0x78] sm:$0xff]
        %v215 = vld [vmem:[%s196 + $0x80] sm:$0xff]
        %v216 = vld [vmem:[%s196 + $0x88] sm:$0xff]
        %v217 = vld [vmem:[%s196 + $0x90] sm:$0xff]
        %v218 = vld [vmem:[%s196 + $0x98] sm:$0xff]
        %v219 = vld [vmem:[%s196 + $0xa0] sm:$0xff]
        %v220 = vld [vmem:[%s196 + $0xa8] sm:$0xff]
        %v221 = vld [vmem:[%s196 + $0xb0] sm:$0xff]
        %v222 = vld [vmem:[%s196 + $0xb8] sm:$0xff]
        %v223 = vld [vmem:[%s196 + $0xc0] sm:$0xff]
        %v224 = vld [vmem:[%s196 + $0xc8] sm:$0xff]
        %v225 = vld [vmem:[%s196 + $0xd0] sm:$0xff]
        %v226 = vld [vmem:[%s196 + $0xd8] sm:$0xff]
        %v227 = vld [vmem:[%s196 + $0xe0] sm:$0xff]
        %v228 = vld [vmem:[%s196 + $0xe8] sm:$0xff]
        %v229 = vld [vmem:[%s196 + $0xf0] sm:$0xff]
        %v230 = vld [vmem:[%s196 + $0xf8] sm:$0xff]
        %v231 = vld [vmem:[%s196 + $0x100] sm:$0xff]
        %v232 = vld [vmem:[%s196 + $0x108] sm:$0xff]
        %v233 = vld [vmem:[%s196 + $0x110] sm:$0xff]
        %v234 = vld [vmem:[%s196 + $0x118] sm:$0xff]
        %v235 = vld [vmem:[%s196 + $0x120] sm:$0xff]
        %v236 = vld [vmem:[%s196 + $0x128] sm:$0xff]
        %v237 = vld [vmem:[%s196 + $0x130] sm:$0xff]
        %v238 = vld [vmem:[%s196 + $0x138] sm:$0xff]
        %v239 = vld [vmem:[%s196 + $0x140] sm:$0xff]
        %v240 = vld [vmem:[%s196 + $0x148] sm:$0xff]
        %v241 = vld [vmem:[%s196 + $0x150] sm:$0xff]
        %v242 = vld [vmem:[%s196 + $0x158] sm:$0xff]
        %v243 = vld [vmem:[%s196 + $0x160] sm:$0xff]
        %v244 = vld [vmem:[%s196 + $0x168] sm:$0xff]
        %v245 = vld [vmem:[%s196 + $0x170] sm:$0xff]
        %v246 = vld [vmem:[%s196 + $0x178] sm:$0xff]
        %v247 = vld [vmem:[%s196 + $0x180] sm:$0xff]
        %v248 = vld [vmem:[%s196 + $0x188] sm:$0xff]
        %v249 = vld [vmem:[%s196 + $0x190] sm:$0xff]
        %v250 = vld [vmem:[%s196 + $0x198] sm:$0xff]
        %v251 = vld [vmem:[%s196 + $0x1a0] sm:$0xff]
        %v252 = vld [vmem:[%s196 + $0x1a8] sm:$0xff]
        %v253 = vld [vmem:[%s196 + $0x1b0] sm:$0xff]
        %v254 = vld [vmem:[%s196 + $0x1b8] sm:$0xff]
        %v255 = vld [vmem:[%s196 + $0x1c0] sm:$0xff]
        %v256 = vld [vmem:[%s196 + $0x1c8] sm:$0xff]
        %v257 = vld [vmem:[%s196 + $0x1d0] sm:$0xff]
        %v258 = vld [vmem:[%s196 + $0x1d8] sm:$0xff]
        %v259 = vld [vmem:[%s196 + $0x1e0] sm:$0xff]
        %v260 = vld [vmem:[%s196 + $0x1e8] sm:$0xff]
        %v261 = vld [vmem:[%s196 + $0x1f0] sm:$0xff]
        %v262 = vld [vmem:[%s196 + $0x1f8] sm:$0xff]
        %v263 = vld [vmem:[%s1] sm:$0xff]
        %v264 = vld [vmem:[%s2] sm:$0x1]
        %v266 = vlaneseq
        %v267 = vshrl.u32 %v266, 7
        %v268 = vsub.s32 0, %v267
        %v269 = vrot.slane %v264, %v268
        %vm271 = vcmask 64512
        %v273 = vsel %vm271, %v199, 0
        %v276 = vsel %vm271, %v200, 0
        %v279 = vsel %vm271, %v201, 0
        %v282 = vsel %vm271, %v202, 0
        %v285 = vsel %vm271, %v203, 0
        %v288 = vsel %vm271, %v204, 0
        %v291 = vsel %vm271, %v205, 0
        %v294 = vsel %vm271, %v206, 0
        %v297 = vsel %vm271, %v207, 0
        %v300 = vsel %vm271, %v208, 0
        %v303 = vsel %vm271, %v209, 0
        %v306 = vsel %vm271, %v210, 0
        %v309 = vsel %vm271, %v211, 0
        %v312 = vsel %vm271, %v212, 0
        %v315 = vsel %vm271, %v213, 0
        %v318 = vsel %vm271, %v214, 0
        %v321 = vsel %vm271, %v215, 0
        %v324 = vsel %vm271, %v216, 0
        %v327 = vsel %vm271, %v217, 0
        %v330 = vsel %vm271, %v218, 0
        %v333 = vsel %vm271, %v219, 0
        %v336 = vsel %vm271, %v220, 0
        %v339 = vsel %vm271, %v221, 0
        %v342 = vsel %vm271, %v222, 0
        %v345 = vsel %vm271, %v223, 0
        %v348 = vsel %vm271, %v224, 0
        %v351 = vsel %vm271, %v225, 0
        %v354 = vsel %vm271, %v226, 0
        %v357 = vsel %vm271, %v227, 0
        %v360 = vsel %vm271, %v228, 0
        %v363 = vsel %vm271, %v229, 0
        %v366 = vsel %vm271, %v230, 0
        %v369 = vsel %vm271, %v231, 0
        %v372 = vsel %vm271, %v232, 0
        %v375 = vsel %vm271, %v233, 0
        %v378 = vsel %vm271, %v234, 0
        %v381 = vsel %vm271, %v235, 0
        %v384 = vsel %vm271, %v236, 0
        %v387 = vsel %vm271, %v237, 0
        %v390 = vsel %vm271, %v238, 0
        %v393 = vsel %vm271, %v239, 0
        %v396 = vsel %vm271, %v240, 0
        %v399 = vsel %vm271, %v241, 0
        %v402 = vsel %vm271, %v242, 0
        %v405 = vsel %vm271, %v243, 0
        %v408 = vsel %vm271, %v244, 0
        %v411 = vsel %vm271, %v245, 0
        %v414 = vsel %vm271, %v246, 0
        %v417 = vsel %vm271, %v247, 0
        %v420 = vsel %vm271, %v248, 0
        %v423 = vsel %vm271, %v249, 0
        %v426 = vsel %vm271, %v250, 0
        %v429 = vsel %vm271, %v251, 0
        %v432 = vsel %vm271, %v252, 0
        %v435 = vsel %vm271, %v253, 0
        %v438 = vsel %vm271, %v254, 0
        %v441 = vsel %vm271, %v255, 0
        %v444 = vsel %vm271, %v256, 0
        %v447 = vsel %vm271, %v257, 0
        %v450 = vsel %vm271, %v258, 0
        %v453 = vsel %vm271, %v259, 0
        %v456 = vsel %vm271, %v260, 0
        %v459 = vsel %vm271, %v261, 0
        %v462 = vsel %vm271, %v262, 0
        %464 = vmatprep.subr.mxu0 0.0
        %465 = vmatpush1.msra.mxu0 %v263
        %466 = vmatprep.subr.mxu0 0.0
        %467 = vmatpush1.msra.mxu0 0.0
        %468 = vmatprep.subr.mxu0 0.0
        %469 = vmatpush1.msra.mxu0 0.0
        %470 = vmatprep.subr.mxu0 0.0
        %471 = vmatpush1.msra.mxu0 0.0
        %472 = vmatprep.subr.mxu0 0.0
        %473 = vmatpush1.msra.mxu0 0.0
        %474 = vmatprep.subr.mxu0 0.0
        %475 = vmatpush1.msra.mxu0 0.0
        %476 = vmatprep.subr.mxu0 0.0
        %477 = vmatpush1.msra.mxu0 0.0
        %478 = vmatprep.subr.mxu0 0.0
        %479 = vmatpush1.msra.mxu0 0.0
        %480 = vmatprep.subr.mxu0 0.0
        %481 = vmatpush1.msra.mxu0 0.0
        %482 = vmatprep.subr.mxu0 0.0
        %483 = vmatpush1.msra.mxu0 0.0
        %484 = vmatprep.subr.mxu0 0.0
        %485 = vmatpush1.msra.mxu0 0.0
        %486 = vmatprep.subr.mxu0 0.0
        %487 = vmatpush1.msra.mxu0 0.0
        %488 = vmatprep.subr.mxu0 0.0
        %489 = vmatpush1.msra.mxu0 0.0
        %490 = vmatprep.subr.mxu0 0.0
        %491 = vmatpush1.msra.mxu0 0.0
        %492 = vmatprep.subr.mxu0 0.0
        %493 = vmatpush1.msra.mxu0 0.0
        %494 = vmatprep.subr.mxu0 0.0
        %495 = vmatpush1.msra.mxu0 0.0
        %496 = vmatprep.subr.mxu0 0.0
        %497 = vmatpush1.msra.mxu0 0.0
        %498 = vmatprep.subr.mxu0 0.0
        %499 = vmatpush1.msra.mxu0 0.0
        %500 = vmatprep.subr.mxu0 0.0
        %501 = vmatpush1.msra.mxu0 0.0
        %502 = vmatprep.subr.mxu0 0.0
        %503 = vmatpush1.msra.mxu0 0.0
        %504 = vmatprep.subr.mxu0 0.0
        %505 = vmatpush1.msra.mxu0 0.0
        %506 = vmatprep.subr.mxu0 0.0
        %507 = vmatpush1.msra.mxu0 0.0
        %508 = vmatprep.subr.mxu0 0.0
        %509 = vmatpush1.msra.mxu0 0.0
        %510 = vmatprep.subr.mxu0 0.0
        %511 = vmatpush1.msra.mxu0 0.0
        %512 = vmatprep.subr.mxu0 0.0
        %513 = vmatpush1.msra.mxu0 0.0
        %514 = vmatprep.subr.mxu0 0.0
        %515 = vmatpush1.msra.mxu0 0.0
        %516 = vmatprep.subr.mxu0 0.0
        %517 = vmatpush1.msra.mxu0 0.0
        %518 = vmatprep.subr.mxu0 0.0
        %519 = vmatpush1.msra.mxu0 0.0
        %520 = vmatprep.subr.mxu0 0.0
        %521 = vmatpush1.msra.mxu0 0.0
        %522 = vmatprep.subr.mxu0 0.0
        %523 = vmatpush1.msra.mxu0 0.0
        %524 = vmatprep.subr.mxu0 0.0
        %525 = vmatpush1.msra.mxu0 0.0
        %526 = vmatprep.subr.mxu0 0.0
        %527 = vmatpush1.msra.mxu0 0.0
        %528 = vmatprep.mubr.f32.mxu0 0.0
        %529 = vmatmul.mubr.f32.gmra.mrb[0].mxu0 %v273
        %v530 = vpop.f32.mrb[0].mxu0
        %v531 = vadd.f32 %v269, %v530
        %v532 = vpop.f32.mrb[0].mxu0
        %533 = vmatprep.mubr.f32.mxu0 0.0
        %534 = vmatmul.mubr.f32.gmra.mrb[0].mxu0 %v276
        %v535 = vpop.f32.mrb[0].mxu0
        %v536 = vadd.f32 %v269, %v535
        %v537 = vpop.f32.mrb[0].mxu0
        %538 = vmatprep.mubr.f32.mxu0 0.0
        %539 = vmatmul.mubr.f32.gmra.mrb[0].mxu0 %v279
        %v540 = vpop.f32.mrb[0].mxu0
        %v541 = vadd.f32 %v269, %v540
        %v542 = vpop.f32.mrb[0].mxu0
        %543 = vmatprep.mubr.f32.mxu0 0.0
        %544 = vmatmul.mubr.f32.gmra.mrb[0].mxu0 %v282
        %v545 = vpop.f32.mrb[0].mxu0
        %v546 = vadd.f32 %v269, %v545
        %v547 = vpop.f32.mrb[0].mxu0
        %548 = vmatprep.mubr.f32.mxu0 0.0
        %549 = vmatmul.mubr.f32.gmra.mrb[0].mxu0 %v285
        %v550 = vpop.f32.mrb[0].mxu0
        %v551 = vadd.f32 %v269, %v550
        %v552 = vpop.f32.mrb[0].mxu0
        %553 = vmatprep.mubr.f32.mxu0 0.0
        %554 = vmatmul.mubr.f32.gmra.mrb[0].mxu0 %v288
        %v555 = vpop.f32.mrb[0].mxu0
        %v556 = vadd.f32 %v269, %v555
        %v557 = vpop.f32.mrb[0].mxu0
        %558 = vmatprep.mubr.f32.mxu0 0.0
        %559 = vmatmul.mubr.f32.gmra.mrb[0].mxu0 %v291
        %v560 = vpop.f32.mrb[0].mxu0
        %v561 = vadd.f32 %v269, %v560
        %v562 = vpop.f32.mrb[0].mxu0
        %563 = vmatprep.mubr.f32.mxu0 0.0
        %564 = vmatmul.mubr.f32.gmra.mrb[0].mxu0 %v294
        %v565 = vpop.f32.mrb[0].mxu0
        %v566 = vadd.f32 %v269, %v565
        %v567 = vpop.f32.mrb[0].mxu0
        %568 = vmatprep.mubr.f32.mxu0 0.0
        %569 = vmatmul.mubr.f32.gmra.mrb[0].mxu0 %v297
        %v570 = vpop.f32.mrb[0].mxu0
        %v571 = vadd.f32 %v269, %v570
        %v572 = vpop.f32.mrb[0].mxu0
        %573 = vmatprep.mubr.f32.mxu0 0.0
        %574 = vmatmul.mubr.f32.gmra.mrb[0].mxu0 %v300
        %v575 = vpop.f32.mrb[0].mxu0
        %v576 = vadd.f32 %v269, %v575
        %v577 = vpop.f32.mrb[0].mxu0
        %578 = vmatprep.mubr.f32.mxu0 0.0
        %579 = vmatmul.mubr.f32.gmra.mrb[0].mxu0 %v303
        %v580 = vpop.f32.mrb[0].mxu0
        %v581 = vadd.f32 %v269, %v580
        %v582 = vpop.f32.mrb[0].mxu0
        %583 = vmatprep.mubr.f32.mxu0 0.0
        %584 = vmatmul.mubr.f32.gmra.mrb[0].mxu0 %v306
        %v585 = vpop.f32.mrb[0].mxu0
        %v586 = vadd.f32 %v269, %v585
        %v587 = vpop.f32.mrb[0].mxu0
        %588 = vmatprep.mubr.f32.mxu0 0.0
        %589 = vmatmul.mubr.f32.gmra.mrb[0].mxu0 %v309
        %v590 = vpop.f32.mrb[0].mxu0
        %v591 = vadd.f32 %v269, %v590
        %v592 = vpop.f32.mrb[0].mxu0
        %593 = vmatprep.mubr.f32.mxu0 0.0
        %594 = vmatmul.mubr.f32.gmra.mrb[0].mxu0 %v312
        %v595 = vpop.f32.mrb[0].mxu0
        %v596 = vadd.f32 %v269, %v595
        %v597 = vpop.f32.mrb[0].mxu0
        %598 = vmatprep.mubr.f32.mxu0 0.0
        %599 = vmatmul.mubr.f32.gmra.mrb[0].mxu0 %v315
        %v600 = vpop.f32.mrb[0].mxu0
        %v601 = vadd.f32 %v269, %v600
        %v602 = vpop.f32.mrb[0].mxu0
        %603 = vmatprep.mubr.f32.mxu0 0.0
        %604 = vmatmul.mubr.f32.gmra.mrb[0].mxu0 %v318
        %v605 = vpop.f32.mrb[0].mxu0
        %v606 = vadd.f32 %v269, %v605
        %v607 = vpop.f32.mrb[0].mxu0
        %608 = vmatprep.mubr.f32.mxu0 0.0
        %609 = vmatmul.mubr.f32.gmra.mrb[0].mxu0 %v321
        %v610 = vpop.f32.mrb[0].mxu0
        %v611 = vadd.f32 %v269, %v610
        %v612 = vpop.f32.mrb[0].mxu0
        %613 = vmatprep.mubr.f32.mxu0 0.0
        %614 = vmatmul.mubr.f32.gmra.mrb[0].mxu0 %v324
        %v615 = vpop.f32.mrb[0].mxu0
        %v616 = vadd.f32 %v269, %v615
        %v617 = vpop.f32.mrb[0].mxu0
        %618 = vmatprep.mubr.f32.mxu0 0.0
        %619 = vmatmul.mubr.f32.gmra.mrb[0].mxu0 %v327
        %v620 = vpop.f32.mrb[0].mxu0
        %v621 = vadd.f32 %v269, %v620
        %v622 = vpop.f32.mrb[0].mxu0
        %623 = vmatprep.mubr.f32.mxu0 0.0
        %624 = vmatmul.mubr.f32.gmra.mrb[0].mxu0 %v330
        %v625 = vpop.f32.mrb[0].mxu0
        %v626 = vadd.f32 %v269, %v625
        %v627 = vpop.f32.mrb[0].mxu0
        %628 = vmatprep.mubr.f32.mxu0 0.0
        %629 = vmatmul.mubr.f32.gmra.mrb[0].mxu0 %v333
        %v630 = vpop.f32.mrb[0].mxu0
        %v631 = vadd.f32 %v269, %v630
        %v632 = vpop.f32.mrb[0].mxu0
        %633 = vmatprep.mubr.f32.mxu0 0.0
        %634 = vmatmul.mubr.f32.gmra.mrb[0].mxu0 %v336
        %v635 = vpop.f32.mrb[0].mxu0
        %v636 = vadd.f32 %v269, %v635
        %v637 = vpop.f32.mrb[0].mxu0
        %638 = vmatprep.mubr.f32.mxu0 0.0
        %639 = vmatmul.mubr.f32.gmra.mrb[0].mxu0 %v339
        %v640 = vpop.f32.mrb[0].mxu0
        %v641 = vadd.f32 %v269, %v640
        %v642 = vpop.f32.mrb[0].mxu0
        %643 = vmatprep.mubr.f32.mxu0 0.0
        %644 = vmatmul.mubr.f32.gmra.mrb[0].mxu0 %v342
        %v645 = vpop.f32.mrb[0].mxu0
        %v646 = vadd.f32 %v269, %v645
        %v647 = vpop.f32.mrb[0].mxu0
        %648 = vmatprep.mubr.f32.mxu0 0.0
        %649 = vmatmul.mubr.f32.gmra.mrb[0].mxu0 %v345
        %v650 = vpop.f32.mrb[0].mxu0
        %v651 = vadd.f32 %v269, %v650
        %v652 = vpop.f32.mrb[0].mxu0
        %653 = vmatprep.mubr.f32.mxu0 0.0
        %654 = vmatmul.mubr.f32.gmra.mrb[0].mxu0 %v348
        %v655 = vpop.f32.mrb[0].mxu0
        %v656 = vadd.f32 %v269, %v655
        %v657 = vpop.f32.mrb[0].mxu0
        %658 = vmatprep.mubr.f32.mxu0 0.0
        %659 = vmatmul.mubr.f32.gmra.mrb[0].mxu0 %v351
        %v660 = vpop.f32.mrb[0].mxu0
        %v661 = vadd.f32 %v269, %v660
        %v662 = vpop.f32.mrb[0].mxu0
        %663 = vmatprep.mubr.f32.mxu0 0.0
        %664 = vmatmul.mubr.f32.gmra.mrb[0].mxu0 %v354
        %v665 = vpop.f32.mrb[0].mxu0
        %v666 = vadd.f32 %v269, %v665
        %v667 = vpop.f32.mrb[0].mxu0
        %668 = vmatprep.mubr.f32.mxu0 0.0
        %669 = vmatmul.mubr.f32.gmra.mrb[0].mxu0 %v357
        %v670 = vpop.f32.mrb[0].mxu0
        %v671 = vadd.f32 %v269, %v670
        %v672 = vpop.f32.mrb[0].mxu0
        %673 = vmatprep.mubr.f32.mxu0 0.0
        %674 = vmatmul.mubr.f32.gmra.mrb[0].mxu0 %v360
        %v675 = vpop.f32.mrb[0].mxu0
        %v676 = vadd.f32 %v269, %v675
        %v677 = vpop.f32.mrb[0].mxu0
        %678 = vmatprep.mubr.f32.mxu0 0.0
        %679 = vmatmul.mubr.f32.gmra.mrb[0].mxu0 %v363
        %v680 = vpop.f32.mrb[0].mxu0
        %v681 = vadd.f32 %v269, %v680
        %v682 = vpop.f32.mrb[0].mxu0
        %683 = vmatprep.mubr.f32.mxu0 0.0
        %684 = vmatmul.mubr.f32.gmra.mrb[0].mxu0 %v366
        %v685 = vpop.f32.mrb[0].mxu0
        %v686 = vadd.f32 %v269, %v685
        %v687 = vpop.f32.mrb[0].mxu0
        %688 = vmatprep.mubr.f32.mxu0 0.0
        %689 = vmatmul.mubr.f32.gmra.mrb[0].mxu0 %v369
        %v690 = vpop.f32.mrb[0].mxu0
        %v691 = vadd.f32 %v269, %v690
        %v692 = vpop.f32.mrb[0].mxu0
        %693 = vmatprep.mubr.f32.mxu0 0.0
        %694 = vmatmul.mubr.f32.gmra.mrb[0].mxu0 %v372
        %v695 = vpop.f32.mrb[0].mxu0
        %v696 = vadd.f32 %v269, %v695
        %v697 = vpop.f32.mrb[0].mxu0
        %698 = vmatprep.mubr.f32.mxu0 0.0
        %699 = vmatmul.mubr.f32.gmra.mrb[0].mxu0 %v375
        %v700 = vpop.f32.mrb[0].mxu0
        %v701 = vadd.f32 %v269, %v700
        %v702 = vpop.f32.mrb[0].mxu0
        %703 = vmatprep.mubr.f32.mxu0 0.0
        %704 = vmatmul.mubr.f32.gmra.mrb[0].mxu0 %v378
        %v705 = vpop.f32.mrb[0].mxu0
        %v706 = vadd.f32 %v269, %v705
        %v707 = vpop.f32.mrb[0].mxu0
        %708 = vmatprep.mubr.f32.mxu0 0.0
        %709 = vmatmul.mubr.f32.gmra.mrb[0].mxu0 %v381
        %v710 = vpop.f32.mrb[0].mxu0
        %v711 = vadd.f32 %v269, %v710
        %v712 = vpop.f32.mrb[0].mxu0
        %713 = vmatprep.mubr.f32.mxu0 0.0
        %714 = vmatmul.mubr.f32.gmra.mrb[0].mxu0 %v384
        %v715 = vpop.f32.mrb[0].mxu0
        %v716 = vadd.f32 %v269, %v715
        %v717 = vpop.f32.mrb[0].mxu0
        %718 = vmatprep.mubr.f32.mxu0 0.0
        %719 = vmatmul.mubr.f32.gmra.mrb[0].mxu0 %v387
        %v720 = vpop.f32.mrb[0].mxu0
        %v721 = vadd.f32 %v269, %v720
        %v722 = vpop.f32.mrb[0].mxu0
        %723 = vmatprep.mubr.f32.mxu0 0.0
        %724 = vmatmul.mubr.f32.gmra.mrb[0].mxu0 %v390
        %v725 = vpop.f32.mrb[0].mxu0
        %v726 = vadd.f32 %v269, %v725
        %v727 = vpop.f32.mrb[0].mxu0
        %728 = vmatprep.mubr.f32.mxu0 0.0
        %729 = vmatmul.mubr.f32.gmra.mrb[0].mxu0 %v393
        %v730 = vpop.f32.mrb[0].mxu0
        %v731 = vadd.f32 %v269, %v730
        %v732 = vpop.f32.mrb[0].mxu0
        %733 = vmatprep.mubr.f32.mxu0 0.0
        %734 = vmatmul.mubr.f32.gmra.mrb[0].mxu0 %v396
        %v735 = vpop.f32.mrb[0].mxu0
        %v736 = vadd.f32 %v269, %v735
        %v737 = vpop.f32.mrb[0].mxu0
        %738 = vmatprep.mubr.f32.mxu0 0.0
        %739 = vmatmul.mubr.f32.gmra.mrb[0].mxu0 %v399
        %v740 = vpop.f32.mrb[0].mxu0
        %v741 = vadd.f32 %v269, %v740
        %v742 = vpop.f32.mrb[0].mxu0
        %743 = vmatprep.mubr.f32.mxu0 0.0
        %744 = vmatmul.mubr.f32.gmra.mrb[0].mxu0 %v402
        %v745 = vpop.f32.mrb[0].mxu0
        %v746 = vadd.f32 %v269, %v745
        %v747 = vpop.f32.mrb[0].mxu0
        %748 = vmatprep.mubr.f32.mxu0 0.0
        %749 = vmatmul.mubr.f32.gmra.mrb[0].mxu0 %v405
        %v750 = vpop.f32.mrb[0].mxu0
        %v751 = vadd.f32 %v269, %v750
        %v752 = vpop.f32.mrb[0].mxu0
        %753 = vmatprep.mubr.f32.mxu0 0.0
        %754 = vmatmul.mubr.f32.gmra.mrb[0].mxu0 %v408
        %v755 = vpop.f32.mrb[0].mxu0
        %v756 = vadd.f32 %v269, %v755
        %v757 = vpop.f32.mrb[0].mxu0
        %758 = vmatprep.mubr.f32.mxu0 0.0
        %759 = vmatmul.mubr.f32.gmra.mrb[0].mxu0 %v411
        %v760 = vpop.f32.mrb[0].mxu0
        %v761 = vadd.f32 %v269, %v760
        %v762 = vpop.f32.mrb[0].mxu0
        %763 = vmatprep.mubr.f32.mxu0 0.0
        %764 = vmatmul.mubr.f32.gmra.mrb[0].mxu0 %v414
        %v765 = vpop.f32.mrb[0].mxu0
        %v766 = vadd.f32 %v269, %v765
        %v767 = vpop.f32.mrb[0].mxu0
        %768 = vmatprep.mubr.f32.mxu0 0.0
        %769 = vmatmul.mubr.f32.gmra.mrb[0].mxu0 %v417
        %v770 = vpop.f32.mrb[0].mxu0
        %v771 = vadd.f32 %v269, %v770
        %v772 = vpop.f32.mrb[0].mxu0
        %773 = vmatprep.mubr.f32.mxu0 0.0
        %774 = vmatmul.mubr.f32.gmra.mrb[0].mxu0 %v420
        %v775 = vpop.f32.mrb[0].mxu0
        %v776 = vadd.f32 %v269, %v775
        %v777 = vpop.f32.mrb[0].mxu0
        %778 = vmatprep.mubr.f32.mxu0 0.0
        %779 = vmatmul.mubr.f32.gmra.mrb[0].mxu0 %v423
        %v780 = vpop.f32.mrb[0].mxu0
        %v781 = vadd.f32 %v269, %v780
        %v782 = vpop.f32.mrb[0].mxu0
        %783 = vmatprep.mubr.f32.mxu0 0.0
        %784 = vmatmul.mubr.f32.gmra.mrb[0].mxu0 %v426
        %v785 = vpop.f32.mrb[0].mxu0
        %v786 = vadd.f32 %v269, %v785
        %v787 = vpop.f32.mrb[0].mxu0
        %788 = vmatprep.mubr.f32.mxu0 0.0
        %789 = vmatmul.mubr.f32.gmra.mrb[0].mxu0 %v429
        %v790 = vpop.f32.mrb[0].mxu0
        %v791 = vadd.f32 %v269, %v790
        %v792 = vpop.f32.mrb[0].mxu0
        %793 = vmatprep.mubr.f32.mxu0 0.0
        %794 = vmatmul.mubr.f32.gmra.mrb[0].mxu0 %v432
        %v795 = vpop.f32.mrb[0].mxu0
        %v796 = vadd.f32 %v269, %v795
        %v797 = vpop.f32.mrb[0].mxu0
        %798 = vmatprep.mubr.f32.mxu0 0.0
        %799 = vmatmul.mubr.f32.gmra.mrb[0].mxu0 %v435
        %v800 = vpop.f32.mrb[0].mxu0
        %v801 = vadd.f32 %v269, %v800
        %v802 = vpop.f32.mrb[0].mxu0
        %803 = vmatprep.mubr.f32.mxu0 0.0
        %804 = vmatmul.mubr.f32.gmra.mrb[0].mxu0 %v438
        %v805 = vpop.f32.mrb[0].mxu0
        %v806 = vadd.f32 %v269, %v805
        %v807 = vpop.f32.mrb[0].mxu0
        %808 = vmatprep.mubr.f32.mxu0 0.0
        %809 = vmatmul.mubr.f32.gmra.mrb[0].mxu0 %v441
        %v810 = vpop.f32.mrb[0].mxu0
        %v811 = vadd.f32 %v269, %v810
        %v812 = vpop.f32.mrb[0].mxu0
        %813 = vmatprep.mubr.f32.mxu0 0.0
        %814 = vmatmul.mubr.f32.gmra.mrb[0].mxu0 %v444
        %v815 = vpop.f32.mrb[0].mxu0
        %v816 = vadd.f32 %v269, %v815
        %v817 = vpop.f32.mrb[0].mxu0
        %818 = vmatprep.mubr.f32.mxu0 0.0
        %819 = vmatmul.mubr.f32.gmra.mrb[0].mxu0 %v447
        %v820 = vpop.f32.mrb[0].mxu0
        %v821 = vadd.f32 %v269, %v820
        %v822 = vpop.f32.mrb[0].mxu0
        %823 = vmatprep.mubr.f32.mxu0 0.0
        %824 = vmatmul.mubr.f32.gmra.mrb[0].mxu0 %v450
        %v825 = vpop.f32.mrb[0].mxu0
        %v826 = vadd.f32 %v269, %v825
        %v827 = vpop.f32.mrb[0].mxu0
        %828 = vmatprep.mubr.f32.mxu0 0.0
        %829 = vmatmul.mubr.f32.gmra.mrb[0].mxu0 %v453
        %v830 = vpop.f32.mrb[0].mxu0
        %v831 = vadd.f32 %v269, %v830
        %v832 = vpop.f32.mrb[0].mxu0
        %833 = vmatprep.mubr.f32.mxu0 0.0
        %834 = vmatmul.mubr.f32.gmra.mrb[0].mxu0 %v456
        %v835 = vpop.f32.mrb[0].mxu0
        %v836 = vadd.f32 %v269, %v835
        %v837 = vpop.f32.mrb[0].mxu0
        %838 = vmatprep.mubr.f32.mxu0 0.0
        %839 = vmatmul.mubr.f32.gmra.mrb[0].mxu0 %v459
        %v840 = vpop.f32.mrb[0].mxu0
        %v841 = vadd.f32 %v269, %v840
        %v842 = vpop.f32.mrb[0].mxu0
        %843 = vmatprep.mubr.f32.mxu0 0.0
        %844 = vmatmul.mubr.f32.gmra.mrb[0].mxu0 %v462
        %v845 = vpop.f32.mrb[0].mxu0
        %v846 = vadd.f32 %v269, %v845
        %v847 = vpop.f32.mrb[0].mxu0
        %848 = vdwg.mxu0
        %vm849 = vcmp.gt.f32.partialorder %v531, 0.0
        %vm850 = vcmp.gt.f32.partialorder %v536, 0.0
        %vm851 = vcmp.gt.f32.partialorder %v541, 0.0
        %vm852 = vcmp.gt.f32.partialorder %v546, 0.0
        %vm853 = vcmp.gt.f32.partialorder %v551, 0.0
        %vm854 = vcmp.gt.f32.partialorder %v556, 0.0
        %vm855 = vcmp.gt.f32.partialorder %v561, 0.0
        %vm856 = vcmp.gt.f32.partialorder %v566, 0.0
        %vm857 = vcmp.gt.f32.partialorder %v571, 0.0
        %vm858 = vcmp.gt.f32.partialorder %v576, 0.0
        %vm859 = vcmp.gt.f32.partialorder %v581, 0.0
        %vm860 = vcmp.gt.f32.partialorder %v586, 0.0
        %vm861 = vcmp.gt.f32.partialorder %v591, 0.0
        %vm862 = vcmp.gt.f32.partialorder %v596, 0.0
        %vm863 = vcmp.gt.f32.partialorder %v601, 0.0
        %vm864 = vcmp.gt.f32.partialorder %v606, 0.0
        %vm865 = vcmp.gt.f32.partialorder %v611, 0.0
        %vm866 = vcmp.gt.f32.partialorder %v616, 0.0
        %vm867 = vcmp.gt.f32.partialorder %v621, 0.0
        %vm868 = vcmp.gt.f32.partialorder %v626, 0.0
        %vm869 = vcmp.gt.f32.partialorder %v631, 0.0
        %vm870 = vcmp.gt.f32.partialorder %v636, 0.0
        %vm871 = vcmp.gt.f32.partialorder %v641, 0.0
        %vm872 = vcmp.gt.f32.partialorder %v646, 0.0
        %vm873 = vcmp.gt.f32.partialorder %v651, 0.0
        %vm874 = vcmp.gt.f32.partialorder %v656, 0.0
        %vm875 = vcmp.gt.f32.partialorder %v661, 0.0
        %vm876 = vcmp.gt.f32.partialorder %v666, 0.0
        %vm877 = vcmp.gt.f32.partialorder %v671, 0.0
        %vm878 = vcmp.gt.f32.partialorder %v676, 0.0
        %vm879 = vcmp.gt.f32.partialorder %v681, 0.0
        %vm880 = vcmp.gt.f32.partialorder %v686, 0.0
        %vm881 = vcmp.gt.f32.partialorder %v691, 0.0
        %vm882 = vcmp.gt.f32.partialorder %v696, 0.0
        %vm883 = vcmp.gt.f32.partialorder %v701, 0.0
        %vm884 = vcmp.gt.f32.partialorder %v706, 0.0
        %vm885 = vcmp.gt.f32.partialorder %v711, 0.0
        %vm886 = vcmp.gt.f32.partialorder %v716, 0.0
        %vm887 = vcmp.gt.f32.partialorder %v721, 0.0
        %vm888 = vcmp.gt.f32.partialorder %v726, 0.0
        %vm889 = vcmp.gt.f32.partialorder %v731, 0.0
        %vm890 = vcmp.gt.f32.partialorder %v736, 0.0
        %vm891 = vcmp.gt.f32.partialorder %v741, 0.0
        %vm892 = vcmp.gt.f32.partialorder %v746, 0.0
        %vm893 = vcmp.gt.f32.partialorder %v751, 0.0
        %vm894 = vcmp.gt.f32.partialorder %v756, 0.0
        %vm895 = vcmp.gt.f32.partialorder %v761, 0.0
        %vm896 = vcmp.gt.f32.partialorder %v766, 0.0
        %vm897 = vcmp.gt.f32.partialorder %v771, 0.0
        %vm898 = vcmp.gt.f32.partialorder %v776, 0.0
        %vm899 = vcmp.gt.f32.partialorder %v781, 0.0
        %vm900 = vcmp.gt.f32.partialorder %v786, 0.0
        %vm901 = vcmp.gt.f32.partialorder %v791, 0.0
        %vm902 = vcmp.gt.f32.partialorder %v796, 0.0
        %vm903 = vcmp.gt.f32.partialorder %v801, 0.0
        %vm904 = vcmp.gt.f32.partialorder %v806, 0.0
        %vm905 = vcmp.gt.f32.partialorder %v811, 0.0
        %vm906 = vcmp.gt.f32.partialorder %v816, 0.0
        %vm907 = vcmp.gt.f32.partialorder %v821, 0.0
        %vm908 = vcmp.gt.f32.partialorder %v826, 0.0
        %vm909 = vcmp.gt.f32.partialorder %v831, 0.0
        %vm910 = vcmp.gt.f32.partialorder %v836, 0.0
        %vm911 = vcmp.gt.f32.partialorder %v841, 0.0
        %vm912 = vcmp.gt.f32.partialorder %v846, 0.0
        %v913 = vld [vmem:[%s3] sm:$0x1]
        %v915 = vlaneseq
        %v916 = vshrl.u32 %v915, 7
        %v917 = vsub.s32 0, %v916
        %v918 = vrot.slane %v913, %v917
        %v920 = vmul.f32 %v531, %v918
        %v921 = vmul.f32 %v536, %v918
        %v922 = vmul.f32 %v541, %v918
        %v923 = vmul.f32 %v546, %v918
        %v924 = vmul.f32 %v551, %v918
        %v925 = vmul.f32 %v556, %v918
        %v926 = vmul.f32 %v561, %v918
        %v927 = vmul.f32 %v566, %v918
        %v928 = vmul.f32 %v571, %v918
        %v929 = vmul.f32 %v576, %v918
        %v930 = vmul.f32 %v581, %v918
        %v931 = vmul.f32 %v586, %v918
        %v932 = vmul.f32 %v591, %v918
        %v933 = vmul.f32 %v596, %v918
        %v934 = vmul.f32 %v601, %v918
        %v935 = vmul.f32 %v606, %v918
        %v936 = vmul.f32 %v611, %v918
        %v937 = vmul.f32 %v616, %v918
        %v938 = vmul.f32 %v621, %v918
        %v939 = vmul.f32 %v626, %v918
        %v940 = vmul.f32 %v631, %v918
        %v941 = vmul.f32 %v636, %v918
        %v942 = vmul.f32 %v641, %v918
        %v943 = vmul.f32 %v646, %v918
        %v944 = vmul.f32 %v651, %v918
        %v945 = vmul.f32 %v656, %v918
        %v946 = vmul.f32 %v661, %v918
        %v947 = vmul.f32 %v666, %v918
        %v948 = vmul.f32 %v671, %v918
        %v949 = vmul.f32 %v676, %v918
        %v950 = vmul.f32 %v681, %v918
        %v951 = vmul.f32 %v686, %v918
        %v952 = vmul.f32 %v691, %v918
        %v953 = vmul.f32 %v696, %v918
        %v954 = vmul.f32 %v701, %v918
        %v955 = vmul.f32 %v706, %v918
        %v956 = vmul.f32 %v711, %v918
        %v957 = vmul.f32 %v716, %v918
        %v958 = vmul.f32 %v721, %v918
        %v959 = vmul.f32 %v726, %v918
        %v960 = vmul.f32 %v731, %v918
        %v961 = vmul.f32 %v736, %v918
        %v962 = vmul.f32 %v741, %v918
        %v963 = vmul.f32 %v746, %v918
        %v964 = vmul.f32 %v751, %v918
        %v965 = vmul.f32 %v756, %v918
        %v966 = vmul.f32 %v761, %v918
        %v967 = vmul.f32 %v766, %v918
        %v968 = vmul.f32 %v771, %v918
        %v969 = vmul.f32 %v776, %v918
        %v970 = vmul.f32 %v781, %v918
        %v971 = vmul.f32 %v786, %v918
        %v972 = vmul.f32 %v791, %v918
        %v973 = vmul.f32 %v796, %v918
        %v974 = vmul.f32 %v801, %v918
        %v975 = vmul.f32 %v806, %v918
        %v976 = vmul.f32 %v811, %v918
        %v977 = vmul.f32 %v816, %v918
        %v978 = vmul.f32 %v821, %v918
        %v979 = vmul.f32 %v826, %v918
        %v980 = vmul.f32 %v831, %v918
        %v981 = vmul.f32 %v836, %v918
        %v982 = vmul.f32 %v841, %v918
        %v983 = vmul.f32 %v846, %v918
        %v984 = vsel %vm849, %v531, %v920
        %v985 = vsel %vm850, %v536, %v921
        %v986 = vsel %vm851, %v541, %v922
        %v987 = vsel %vm852, %v546, %v923
        %v988 = vsel %vm853, %v551, %v924
        %v989 = vsel %vm854, %v556, %v925
        %v990 = vsel %vm855, %v561, %v926
        %v991 = vsel %vm856, %v566, %v927
        %v992 = vsel %vm857, %v571, %v928
        %v993 = vsel %vm858, %v576, %v929
        %v994 = vsel %vm859, %v581, %v930
        %v995 = vsel %vm860, %v586, %v931
        %v996 = vsel %vm861, %v591, %v932
        %v997 = vsel %vm862, %v596, %v933
        %v998 = vsel %vm863, %v601, %v934
        %v999 = vsel %vm864, %v606, %v935
        %v1000 = vsel %vm865, %v611, %v936
        %v1001 = vsel %vm866, %v616, %v937
        %v1002 = vsel %vm867, %v621, %v938
        %v1003 = vsel %vm868, %v626, %v939
        %v1004 = vsel %vm869, %v631, %v940
        %v1005 = vsel %vm870, %v636, %v941
        %v1006 = vsel %vm871, %v641, %v942
        %v1007 = vsel %vm872, %v646, %v943
        %v1008 = vsel %vm873, %v651, %v944
        %v1009 = vsel %vm874, %v656, %v945
        %v1010 = vsel %vm875, %v661, %v946
        %v1011 = vsel %vm876, %v666, %v947
        %v1012 = vsel %vm877, %v671, %v948
        %v1013 = vsel %vm878, %v676, %v949
        %v1014 = vsel %vm879, %v681, %v950
        %v1015 = vsel %vm880, %v686, %v951
        %v1016 = vsel %vm881, %v691, %v952
        %v1017 = vsel %vm882, %v696, %v953
        %v1018 = vsel %vm883, %v701, %v954
        %v1019 = vsel %vm884, %v706, %v955
        %v1020 = vsel %vm885, %v711, %v956
        %v1021 = vsel %vm886, %v716, %v957
        %v1022 = vsel %vm887, %v721, %v958
        %v1023 = vsel %vm888, %v726, %v959
        %v1024 = vsel %vm889, %v731, %v960
        %v1025 = vsel %vm890, %v736, %v961
        %v1026 = vsel %vm891, %v741, %v962
        %v1027 = vsel %vm892, %v746, %v963
        %v1028 = vsel %vm893, %v751, %v964
        %v1029 = vsel %vm894, %v756, %v965
        %v1030 = vsel %vm895, %v761, %v966
        %v1031 = vsel %vm896, %v766, %v967
        %v1032 = vsel %vm897, %v771, %v968
        %v1033 = vsel %vm898, %v776, %v969
        %v1034 = vsel %vm899, %v781, %v970
        %v1035 = vsel %vm900, %v786, %v971
        %v1036 = vsel %vm901, %v791, %v972
        %v1037 = vsel %vm902, %v796, %v973
        %v1038 = vsel %vm903, %v801, %v974
        %v1039 = vsel %vm904, %v806, %v975
        %v1040 = vsel %vm905, %v811, %v976
        %v1041 = vsel %vm906, %v816, %v977
        %v1042 = vsel %vm907, %v821, %v978
        %v1043 = vsel %vm908, %v826, %v979
        %v1044 = vsel %vm909, %v831, %v980
        %v1045 = vsel %vm910, %v836, %v981
        %v1046 = vsel %vm911, %v841, %v982
        %v1047 = vsel %vm912, %v846, %v983
        %1048 = vst [vmem:[%s191] sm:$0xff] %v984
        %1049 = vst [vmem:[%s191 + $0x8] sm:$0xff] %v985
        %1050 = vst [vmem:[%s191 + $0x10] sm:$0xff] %v986
        %1051 = vst [vmem:[%s191 + $0x18] sm:$0xff] %v987
        %1052 = vst [vmem:[%s191 + $0x20] sm:$0xff] %v988
        %1053 = vst [vmem:[%s191 + $0x28] sm:$0xff] %v989
        %1054 = vst [vmem:[%s191 + $0x30] sm:$0xff] %v990
        %1055 = vst [vmem:[%s191 + $0x38] sm:$0xff] %v991
        %1056 = vst [vmem:[%s191 + $0x40] sm:$0xff] %v992
        %1057 = vst [vmem:[%s191 + $0x48] sm:$0xff] %v993
        %1058 = vst [vmem:[%s191 + $0x50] sm:$0xff] %v994
        %1059 = vst [vmem:[%s191 + $0x58] sm:$0xff] %v995
        %1060 = vst [vmem:[%s191 + $0x60] sm:$0xff] %v996
        %1061 = vst [vmem:[%s191 + $0x68] sm:$0xff] %v997
        %1062 = vst [vmem:[%s191 + $0x70] sm:$0xff] %v998
        %1063 = vst [vmem:[%s191 + $0x78] sm:$0xff] %v999
        %1064 = vst [vmem:[%s191 + $0x80] sm:$0xff] %v1000
        %1065 = vst [vmem:[%s191 + $0x88] sm:$0xff] %v1001
        %1066 = vst [vmem:[%s191 + $0x90] sm:$0xff] %v1002
        %1067 = vst [vmem:[%s191 + $0x98] sm:$0xff] %v1003
        %1068 = vst [vmem:[%s191 + $0xa0] sm:$0xff] %v1004
        %1069 = vst [vmem:[%s191 + $0xa8] sm:$0xff] %v1005
        %1070 = vst [vmem:[%s191 + $0xb0] sm:$0xff] %v1006
        %1071 = vst [vmem:[%s191 + $0xb8] sm:$0xff] %v1007
        %1072 = vst [vmem:[%s191 + $0xc0] sm:$0xff] %v1008
        %1073 = vst [vmem:[%s191 + $0xc8] sm:$0xff] %v1009
        %1074 = vst [vmem:[%s191 + $0xd0] sm:$0xff] %v1010
        %1075 = vst [vmem:[%s191 + $0xd8] sm:$0xff] %v1011
        %1076 = vst [vmem:[%s191 + $0xe0] sm:$0xff] %v1012
        %1077 = vst [vmem:[%s191 + $0xe8] sm:$0xff] %v1013
        %1078 = vst [vmem:[%s191 + $0xf0] sm:$0xff] %v1014
        %1079 = vst [vmem:[%s191 + $0xf8] sm:$0xff] %v1015
        %1080 = vst [vmem:[%s191 + $0x100] sm:$0xff] %v1016
        %1081 = vst [vmem:[%s191 + $0x108] sm:$0xff] %v1017
        %1082 = vst [vmem:[%s191 + $0x110] sm:$0xff] %v1018
        %1083 = vst [vmem:[%s191 + $0x118] sm:$0xff] %v1019
        %1084 = vst [vmem:[%s191 + $0x120] sm:$0xff] %v1020
        %1085 = vst [vmem:[%s191 + $0x128] sm:$0xff] %v1021
        %1086 = vst [vmem:[%s191 + $0x130] sm:$0xff] %v1022
        %1087 = vst [vmem:[%s191 + $0x138] sm:$0xff] %v1023
        %1088 = vst [vmem:[%s191 + $0x140] sm:$0xff] %v1024
        %1089 = vst [vmem:[%s191 + $0x148] sm:$0xff] %v1025
        %1090 = vst [vmem:[%s191 + $0x150] sm:$0xff] %v1026
        %1091 = vst [vmem:[%s191 + $0x158] sm:$0xff] %v1027
        %1092 = vst [vmem:[%s191 + $0x160] sm:$0xff] %v1028
        %1093 = vst [vmem:[%s191 + $0x168] sm:$0xff] %v1029
        %1094 = vst [vmem:[%s191 + $0x170] sm:$0xff] %v1030
        %1095 = vst [vmem:[%s191 + $0x178] sm:$0xff] %v1031
        %1096 = vst [vmem:[%s191 + $0x180] sm:$0xff] %v1032
        %1097 = vst [vmem:[%s191 + $0x188] sm:$0xff] %v1033
        %1098 = vst [vmem:[%s191 + $0x190] sm:$0xff] %v1034
        %1099 = vst [vmem:[%s191 + $0x198] sm:$0xff] %v1035
        %1100 = vst [vmem:[%s191 + $0x1a0] sm:$0xff] %v1036
        %1101 = vst [vmem:[%s191 + $0x1a8] sm:$0xff] %v1037
        %1102 = vst [vmem:[%s191 + $0x1b0] sm:$0xff] %v1038
        %1103 = vst [vmem:[%s191 + $0x1b8] sm:$0xff] %v1039
        %1104 = vst [vmem:[%s191 + $0x1c0] sm:$0xff] %v1040
        %1105 = vst [vmem:[%s191 + $0x1c8] sm:$0xff] %v1041
        %1106 = vst [vmem:[%s191 + $0x1d0] sm:$0xff] %v1042
        %1107 = vst [vmem:[%s191 + $0x1d8] sm:$0xff] %v1043
        %1108 = vst [vmem:[%s191 + $0x1e0] sm:$0xff] %v1044
        %1109 = vst [vmem:[%s191 + $0x1e8] sm:$0xff] %v1045
        %1110 = vst [vmem:[%s191 + $0x1f0] sm:$0xff] %v1046
        %1111 = vst [vmem:[%s191 + $0x1f8] sm:$0xff] %v1047
        %s1112 = sand.u32 %s115, 1
        %s1113 = scalar_lea.sflag [#allocation3], %s1112
        %s1114 = sand.u32 %s115, 1
        %s1115 = smul.addr %s1114, 512
        %s1116 = scalar_lea.vmem [#allocation2], %s1115
        // Predicated region
        $region37: #{tpu_custom_call.1} parent=35 // pred_check
          %p1117 = pneg %p125
        $region38: #{tpu_custom_call.1} parent=35 // pred_check_branch
          %1119 = sbr.rel (%p1117) target = $region40
        $region39: #{tpu_custom_call.1} parent=35 // pred_region
          %s1120 = smul.u32 64, %s18
          %s1122 = ssub.s32 8192, 8192
          %1123 = vsyncadd %s1113, %s1122
          %s1124 = smul.addr %s1120, 128
          %s1125 = scalar_lea.hbm %s4, %s1124
          %s1126 = sshll.u32 %s1116, 4
          %s1127 = int_to_ptr.vmem [resolvable:$true] %s1126
          %1132 = dma.vmem_to_hbm [thread:$0]  %s1127, 8192, %s1125, %s1113, 128, 128, 8
        $region40: #{tpu_custom_call.1} parent=35 // pred_fallthru
          _
      $region36: #{tpu_custom_call.1} parent=5 // pred_fallthru
        _
      %p1133 = scmp.le.s32.totalorder 2, %s13
      // Predicated region
      $region41: #{tpu_custom_call.1} parent=5 // pred_check
        %p1134 = pneg %p1133
      $region42: #{tpu_custom_call.1} parent=5 // pred_check_branch
        %1136 = sbr.rel (%p1134) target = $region44
      $region43: #{tpu_custom_call.1} parent=5 // pred_region
        %s1137 = ssub.s32 %s13, 2
        // Predicated region
        $region45: #{tpu_custom_call.1} parent=43 // pred_check
          %p1138 = pneg %p131
        $region46: #{tpu_custom_call.1} parent=43 // pred_check_branch
          %1140 = sbr.rel (%p1138) target = $region48
        $region47: #{tpu_custom_call.1} parent=43 // pred_region
          %s1141 = sand.u32 %s116, 1
          %s1142 = scalar_lea.sflag [#allocation3], %s1141
          %s1143 = sand.u32 %s116, 1
          %s1144 = smul.addr %s1143, 512
          %s1145 = scalar_lea.vmem [#allocation2], %s1144
          %1146 = dma.done %s1142, 8192
        $region48: #{tpu_custom_call.1} parent=43 // pred_fallthru
          _
      $region44: #{tpu_custom_call.1} parent=5 // pred_fallthru
        _
    $region6: #{tpu_custom_call.1} parent=1 // loop_footer
      %s17 = sadd.s32 1, %s13
    $region7: #{tpu_custom_call.1} parent=1 // loop_footer_branch
      %12 = sbr.rel target = $region3
    $region8: #{tpu_custom_call.1} parent=1 // loop_exit
      _
    %1147 = vsyncpa [#allocation3], 1
    %s1148 = scalar_lea.sflag [#allocation3], 1
    %1149 = vsyncpa %s1148, 1

</llo_original>
